<compile_context>
chip_gen: v7x
topology: tpu7x:2x2x1
jax: 0.10.0
libtpu: 0.0.40
codegen_flags: <defaults>
</compile_context>

<pallas_src>
import math

import jax
import jax.numpy as jnp
from jax.experimental import pallas as pl
from jax.experimental.pallas import tpu as pltpu


def _pos_enc_kernel(scale_ref, x_ref, pe_ref, o_ref):
    # scale_ref : SMEM (1,) f32
    # x_ref     : VMEM (TS, B*D)  x.dtype
    # pe_ref    : VMEM (TS, D)    pe dtype (size-1 batch dim squeezed away)
    # o_ref     : VMEM (TS, B*D)  x.dtype
    d = pe_ref.shape[-1]
    b = x_ref.shape[-1] // d                      # static (from block shapes)
    pe_scaled = scale_ref[0] * pe_ref[...].astype(jnp.float32)   # (TS, D), once/tile
    if b > 1:
        # Replicate pe across the batch chunks folded into the lane axis ONCE,
        # so the add + store below are a single full-width (unmasked) pass.
        pe_scaled = jnp.concatenate([pe_scaled] * b, axis=-1)    # (TS, B*D)
    o_ref[...] = (x_ref[...] + pe_scaled).astype(o_ref.dtype)


def make_pe_table(d_model: int, max_len: int = 5000,
                  dtype=jnp.float32) -> jnp.ndarray:
    """Reproduce the PyTorch pe buffer: shape [max_len, 1, d_model] (d_model even)."""
    assert d_model % 2 == 0, "PositionalEncoding requires an even d_model"
    position = jnp.arange(max_len, dtype=jnp.float32)[:, None]              # (L, 1)
    div_term = jnp.exp(jnp.arange(0, d_model, 2, dtype=jnp.float32)
                       * (-math.log(10000.0) / d_model))                    # (D/2,)
    angles = position * div_term                                            # (L, D/2)
    pe = jnp.zeros((max_len, d_model), dtype=jnp.float32)
    pe = pe.at[:, 0::2].set(jnp.sin(angles))
    pe = pe.at[:, 1::2].set(jnp.cos(angles))
    return pe[:, None, :].astype(dtype)                                     # (L, 1, D)


def _sublane_multiple(dtype) -> int:
    """Rows per packed (sublane, 128) tile: 8 for 4B, 16 for 2B, 32 for 1B dtypes."""
    return max(8, 32 // jnp.dtype(dtype).itemsize)


def _default_tile_bytes() -> int:
    """Per-generation target bytes of x per tile (amortize ~0.35us/step overhead)."""
    try:
        kind = jax.devices()[0].device_kind.lower()
    except Exception:  # pragma: no cover - defensive
        return 4 << 20
    if "v7" in kind:
        return 6 << 20          # ~3.2 TB/s HBM -> need MiB+ tiles to hide step cost
    if "v6" in kind:
        return 4 << 20
    return 2 << 20              # v5e & older: already near roofline at ~2 MiB


def _choose_seq_tile(S: int, target_rows: int, sublane: int,
                     min_tiles: int, max_rows: int) -> int:
    """Sequence-tile rows: byte-target bound, >=min_tiles grid steps, VMEM bound."""
    ts = max(1, target_rows)
    # Keep at least `min_tiles` grid steps when S allows it: megacore (v7x)
    # only helps if both TensorCores get tiles, and pipelining needs steps.
    ts = min(ts, max(sublane, pl.cdiv(S, min_tiles)))
    ts = min(ts, max(sublane, max_rows))
    if ts >= S:
        return S                              # full-dim block is always legal
    ts = max(sublane, (ts // sublane) * sublane)
    return min(ts, S)


def positional_encoding_forward(x: jnp.ndarray,
                                pe: jnp.ndarray,
                                scale: jnp.ndarray,
                                *,
                                target_tile_bytes: int | None = None,
                                min_tiles: int = 8) -> jnp.ndarray:
    """x: [S, B, D]; pe: [max_len, 1, D]; scale: [1] f32. Returns x + scale*pe[:S]."""
    S, B, D = x.shape
    L, one, Dp = pe.shape
    assert one == 1 and Dp == D, "pe must have shape (max_len, 1, d_model)"
    if S > L:
        raise ValueError(f"seq_len={S} exceeds positional-encoding max_len={L}")
    if target_tile_bytes is None:
        target_tile_bytes = _default_tile_bytes()

    x2 = x.reshape(S, B * D)                            # free, contiguous reshape

    row_bytes = B * D * x.dtype.itemsize                # one x row
    sublane = _sublane_multiple(x.dtype)
    # Double-buffered streams per row: x in + out (x dtype) + pe (pe dtype).
    per_row_pipelined = 2 * (2 * row_bytes + D * jnp.dtype(pe.dtype).itemsize)
    max_rows = max(sublane, (44 << 20) // max(per_row_pipelined, 1))  # ~44 MiB budget

    TS = _choose_seq_tile(S, target_tile_bytes // max(row_bytes, 1),
                          sublane, min_tiles, max_rows)
    grid = (pl.cdiv(S, TS),)                            # ragged last tile handled

    vmem_needed = TS * per_row_pipelined + (1 << 20)    # + slack for compiler scratch
    vmem_limit = int(min(max(vmem_needed, 32 << 20), 64 << 20))

    bytes_accessed = (2 * S * B * D * x.dtype.itemsize
                      + S * D * jnp.dtype(pe.dtype).itemsize)
    cost = pl.CostEstimate(flops=2 * S * B * D, transcendentals=0,
                           bytes_accessed=bytes_accessed)

    out2 = pl.pallas_call(
        _pos_enc_kernel,
        out_shape=jax.ShapeDtypeStruct((S, B * D), x.dtype),
        grid_spec=pltpu.PrefetchScalarGridSpec(
            num_scalar_prefetch=0,
            grid=grid,
            in_specs=[
                pl.BlockSpec(memory_space=pltpu.SMEM),            # scale, whole, SMEM
                pl.BlockSpec((TS, B * D), lambda i: (i, 0)),      # x tile
                # pe straight from its (max_len, 1, D) buffer; batch dim squeezed.
                pl.BlockSpec((TS, None, D), lambda i: (i, 0, 0)),
            ],
            out_specs=pl.BlockSpec((TS, B * D), lambda i: (i, 0)),
        ),
        compiler_params=pltpu.CompilerParams(
            dimension_semantics=("parallel",),       # independent S-tiles; 2x on v7x
            vmem_limit_bytes=vmem_limit),
        cost_estimate=cost,
    )(scale, x2, pe)

    return out2.reshape(S, B, D)


if __name__ == "__main__":
    # Deterministic parameter init, mirroring __init__:
    scale = jnp.ones((1,), dtype=jnp.float32) * 0.1    # nn.Parameter(ones(1)*0.1)

    # Case 1: small shapes consistent with the module: [seq, batch, d_model].
    S, B, D = 8, 2, 32
    x = jax.random.normal(jax.random.PRNGKey(0), (S, B, D), dtype=jnp.float32)
    pe = make_pe_table(D, max_len=5000)                # registered buffer
    y = jax.block_until_ready(positional_encoding_forward(x, pe, scale))
    y_ref = x + scale[0] * pe[:S]
    assert jnp.allclose(y, y_ref, atol=1e-6), "case 1 mismatch vs reference"

    # Case 2: multi-step pipelined grid, D % 128 == 0, ragged (clipped) last tile.
    S2, B2, D2 = 300, 4, 128
    xl = jax.random.normal(jax.random.PRNGKey(1), (S2, B2, D2), dtype=jnp.float32)
    pel = make_pe_table(D2, max_len=512)
    yl = jax.block_until_ready(
        positional_encoding_forward(xl, pel, scale, target_tile_bytes=64 * 1024))
    yl_ref = xl + scale[0] * pel[:S2]
    assert jnp.allclose(yl, yl_ref, atol=1e-6), "case 2 mismatch vs reference"

    # Case 3: D % 128 != 0 with b>1 lane-replication and a ragged last tile.
    S3, B3, D3 = 44, 3, 32
    xs = jax.random.normal(jax.random.PRNGKey(2), (S3, B3, D3), dtype=jnp.float32)
    pes = make_pe_table(D3, max_len=64)
    ys = jax.block_until_ready(
        positional_encoding_forward(xs, pes, scale, target_tile_bytes=2048))
    ys_ref = xs + scale[0] * pes[:S3]
    assert jnp.allclose(ys, ys_ref, atol=1e-6), "case 3 mismatch vs reference"

    print("KERNEL_OK")
</pallas_src>

<mosaic_0001>
module attributes {stable_mosaic.version = 11 : i64} {
  func.func @_pos_enc_kernel(%arg0: i32, %arg1: memref<1xf32, #tpu.memory_space<smem>>, %arg2: memref<8x64xf32, #tpu.memory_space<vmem>>, %arg3: memref<8x1x32xf32, #tpu.memory_space<vmem>>, %arg4: memref<8x64xf32, #tpu.memory_space<vmem>>) attributes {dimension_semantics = [#tpu.dimension_semantics<parallel>], iteration_bounds = array<i64: 1>, scalar_prefetch = 0 : i64, scratch_operands = 0 : i64, tpu.core_type = #tpu.core_type<tc>, window_params = [{transform_indices = @transform_0, window_bounds = array<i64: 1>}, {transform_indices = @transform_1, window_bounds = array<i64: 8, 64>}, {transform_indices = @transform_2, window_bounds = array<i64: 8, 1, 32>}, {transform_indices = @transform_3, window_bounds = array<i64: 8, 64>}]} {
    %c0 = arith.constant 0 : index
    %0 = memref.load %arg1[%c0] : memref<1xf32, #tpu.memory_space<smem>>
    %c0_0 = arith.constant 0 : index
    %c0_1 = arith.constant 0 : index
    %c0_2 = arith.constant 0 : index
    %1 = vector.load %arg3[%c0_0, %c0_1, %c0_2] : memref<8x1x32xf32, #tpu.memory_space<vmem>>, vector<8x1x32xf32>
    %2 = vector.shape_cast %1 : vector<8x1x32xf32> to vector<8x32xf32>
    %3 = vector.broadcast %0 : f32 to vector<8x32xf32>
    %4 = arith.mulf %3, %2 : vector<8x32xf32>
    %5 = tpu.concatenate %4, %4 in 1 : vector<8x32xf32>, vector<8x32xf32> -> vector<8x64xf32>
    %c0_3 = arith.constant 0 : index
    %c0_4 = arith.constant 0 : index
    %6 = vector.load %arg2[%c0_3, %c0_4] : memref<8x64xf32, #tpu.memory_space<vmem>>, vector<8x64xf32>
    %7 = arith.addf %6, %5 : vector<8x64xf32>
    %c0_5 = arith.constant 0 : index
    %c0_6 = arith.constant 0 : index
    %8 = vector.load %arg4[%c0_5, %c0_6] : memref<8x64xf32, #tpu.memory_space<vmem>>, vector<8x64xf32>
    tpu.vector_store %arg4[%c0_5, %c0_6], %7 {strides = array<i32>} : memref<8x64xf32, #tpu.memory_space<vmem>>, vector<8x64xf32>,
    return
  }
  func.func @transform_0(%arg0: i32) -> i32 {
    %c0_i32 = arith.constant 0 : i32
    %c0_i32_0 = arith.constant 0 : i32
    return %c0_i32 : i32
  }
  func.func @transform_1(%arg0: i32) -> (i32, i32) {
    %c0_i32 = arith.constant 0 : i32
    %c0_i32_0 = arith.constant 0 : i32
    return %arg0, %c0_i32 : i32, i32
  }
  func.func @transform_2(%arg0: i32) -> (i32, i32, i32) {
    %c0_i32 = arith.constant 0 : i32
    %c0_i32_0 = arith.constant 0 : i32
    %c0_i32_1 = arith.constant 0 : i32
    return %arg0, %c0_i32, %c0_i32_0 : i32, i32, i32
  }
  func.func @transform_3(%arg0: i32) -> (i32, i32) {
    %c0_i32 = arith.constant 0 : i32
    %c0_i32_0 = arith.constant 0 : i32
    return %arg0, %c0_i32 : i32, i32
  }
}

</mosaic_0001>

<llo_original>
// kernel: tpu_custom_call.1
$region0: #{tpu_custom_call.1}
  #allocation0 [shape = 'u32[]', space=smem, size = 0x4, offset = 0x4, fixed_abs, tag = 'smem constant byte address 0x4 - core index']
  #allocation1 [shape = 'u32[144,128]{1,0:T(1,128)}', space=vmem, size = 0x12000, scoped, tag = 'internal scratch']
  #allocation2 [shape = 'f32[1]{0:T(128)S(6)}', space=smem, size = 0x200, scoped, tag = 'scoped memory for tpu_custom_call.1']
  %s0 = inlined_call_operand.<no memory space> [shape: f32[1], index: 0, kind: input, shape index: {}]
  %s1 = inlined_call_operand.vmem [shape: f32[8,64], index: 1, kind: input, shape index: {}]
  %s2 = inlined_call_operand.vmem [shape: f32[5000,1,32], index: 2, kind: input, shape index: {}]
  %s3 = inlined_call_operand.hbm [shape: f32[8,64], index: 3, kind: output, shape index: {}]
  %s4 = sld [smem:[#allocation0]]
  $region22: #{tpu_custom_call.1} parent=0
    _
  %s6 = ssub.s32 1, %s4
  %s7 = scalar_select 0, %s6, %s4
  %8 = sst [smem:[#allocation2]] %s0
  $region1: #{tpu_custom_call.1} parent=0
    #allocation3 [shape = 'u8[4096]{0}', space=vmem, size = 0x1000, scoped, tag = 'output window, operand 0, single buffered']
    #allocation4 [shape = 's32[1]{0}', space=sflag, size = 0x4, scoped, tag = 'scoped memory for tpu_custom_call.1']
    %9 = vsyncpa [#allocation4], 0
    // Predicated region
    $region2: #{tpu_custom_call.1} parent=1 // pred_check
      _
    $region3: #{tpu_custom_call.1} parent=1 // pred_check_branch
      %11 = sbr.rel (0) target = $region5
    $region4: #{tpu_custom_call.1} parent=1 // pred_region
      _
    $region5: #{tpu_custom_call.1} parent=1 // pred_fallthru
      _
    // Predicated region
    $region6: #{tpu_custom_call.1} parent=1 // pred_check
      _
    $region7: #{tpu_custom_call.1} parent=1 // pred_check_branch
      %13 = sbr.rel (0) target = $region9
    $region8: #{tpu_custom_call.1} parent=1 // pred_region
      _
    $region9: #{tpu_custom_call.1} parent=1 // pred_fallthru
      _
    // Predicated region
    $region10: #{tpu_custom_call.1} parent=1 // pred_check
      _
    $region11: #{tpu_custom_call.1} parent=1 // pred_check_branch
      %15 = sbr.rel (0) target = $region13
    $region12: #{tpu_custom_call.1} parent=1 // pred_region
      _
    $region13: #{tpu_custom_call.1} parent=1 // pred_fallthru
      _
    %s16 = sld [smem:[#allocation2]]
    %v17 = vld [vmem:[%s2] sm:$0x1]
    %v18 = vld [vmem:[%s2 + $0x1] sm:$0x1]
    %v19 = vld [vmem:[%s2 + $0x2] sm:$0x1]
    %v20 = vld [vmem:[%s2 + $0x3] sm:$0x1]
    %v21 = vld [vmem:[%s2 + $0x4] sm:$0x1]
    %v22 = vld [vmem:[%s2 + $0x5] sm:$0x1]
    %v23 = vld [vmem:[%s2 + $0x6] sm:$0x1]
    %v24 = vld [vmem:[%s2 + $0x7] sm:$0x1]
    %v25 = vstv %s16
    %v26 = vmul.f32 %v25, %v17
    %v27 = vmul.f32 %v25, %v18
    %v28 = vmul.f32 %v25, %v19
    %v29 = vmul.f32 %v25, %v20
    %v30 = vmul.f32 %v25, %v21
    %v31 = vmul.f32 %v25, %v22
    %v32 = vmul.f32 %v25, %v23
    %v33 = vmul.f32 %v25, %v24
    %v42 = vcombine.low %v26, %v27
    %v43 = vcombine.low %v28, %v29
    %v44 = vcombine.low %v30, %v31
    %v45 = vcombine.low %v32, %v33
    %v47 = vunpack.c.l.s4 1966171168
    %v48 = vunpack.c.0.s8 %v47
    %v49 = vlaneseq
    %v50 = vshrl.u32 %v49, 7
    %v51 = vsub.s32 %v48, %v50
    %v52 = vrot.slane %v42, %v51
    %v54 = vunpack.c.l.s4 1966171168
    %v55 = vunpack.c.0.s8 %v54
    %v56 = vlaneseq
    %v57 = vshrl.u32 %v56, 7
    %v58 = vsub.s32 %v55, %v57
    %v59 = vrot.slane %v43, %v58
    %v61 = vunpack.c.l.s4 1966171168
    %v62 = vunpack.c.0.s8 %v61
    %v63 = vlaneseq
    %v64 = vshrl.u32 %v63, 7
    %v65 = vsub.s32 %v62, %v64
    %v66 = vrot.slane %v44, %v65
    %v68 = vunpack.c.l.s4 1966171168
    %v69 = vunpack.c.0.s8 %v68
    %v70 = vlaneseq
    %v71 = vshrl.u32 %v70, 7
    %v72 = vsub.s32 %v69, %v71
    %v73 = vrot.slane %v45, %v72
    %v74 = vcombine.low %v52, %v59
    %v75 = vcombine.low %v66, %v73
    %v77 = vunpack.c.l.s4 1966171168
    %v78 = vunpack.c.0.s8 %v77
    %v79 = vlaneseq
    %v80 = vshrl.u32 %v79, 7
    %v81 = vsub.s32 %v78, %v80
    %v82 = vrot.slane %v74, %v81
    %v84 = vunpack.c.l.s4 1966171168
    %v85 = vunpack.c.0.s8 %v84
    %v86 = vlaneseq
    %v87 = vshrl.u32 %v86, 7
    %v88 = vsub.s32 %v85, %v87
    %v89 = vrot.slane %v75, %v88
    %v90 = vcombine.low %v82, %v89
    %92 = vrot.lane.b32.xlu0 %v90, 32
    %v93 = vpop.permute.xlu0 %92
    %vm95 = vcmask 261120
    %v96 = vsel %vm95, %v90, %v93
    %v97 = vld [vmem:[%s1] sm:$0xff]
    %v98 = vadd.f32 %v97, %v96
    %vm99 = vcmask 523264
    %100 = vst.msk [vmem:[#allocation3] sm:$0xff] %vm99, %v98
    // Predicated region
    $region14: #{tpu_custom_call.1} parent=1 // pred_check
      _
    $region15: #{tpu_custom_call.1} parent=1 // pred_check_branch
      %102 = sbr.rel (0) target = $region17
    $region16: #{tpu_custom_call.1} parent=1 // pred_region
      %s104 = ssub.s32 128, 128
      %105 = vsyncadd [#allocation4], %s104
      %s107 = sshll.u32 [#allocation3], 4
      %s108 = int_to_ptr.vmem [resolvable:$true] %s107
      %110 = dma.vmem_to_hbm [thread:$0]  %s108, 128, %s3, [#allocation4]
    $region17: #{tpu_custom_call.1} parent=1 // pred_fallthru
      _
    // Predicated region
    $region18: #{tpu_custom_call.1} parent=1 // pred_check
      _
    $region19: #{tpu_custom_call.1} parent=1 // pred_check_branch
      %112 = sbr.rel (0) target = $region21
    $region20: #{tpu_custom_call.1} parent=1 // pred_region
      %113 = dma.done [#allocation4], 128
    $region21: #{tpu_custom_call.1} parent=1 // pred_fallthru
      _
    %114 = vsyncpa [#allocation4], 1

</llo_original>
